<compile_context>
chip_gen: v7x
topology: tpu7x:2x2x1
jax: 0.10.0
libtpu: 0.0.40
codegen_flags: <defaults>
</compile_context>

<pallas_src>
import functools

import jax
import jax.numpy as jnp
from jax.experimental import pallas as pl
from jax.experimental.pallas import tpu as pltpu


def _cdiv(a, b):
    return -(-a // b)


def _round_up(x, m):
    return ((x + m - 1) // m) * m


def _policy_mlp_kernel(x_ref, w1_ref, b1_ref, w2_ref, b2_ref, w3_ref, b3_ref,
                       o_ref, *, compute_dtype):
    # Fused 3-layer MLP on one batch tile. Matmuls hit the MXU (weights are
    # already [K, N]); bias-add / ReLU run on the VPU in f32.
    x = x_ref[...].astype(compute_dtype)

    # Layer 1: x @ W1t + b1, ReLU
    h1 = jnp.dot(x, w1_ref[...], preferred_element_type=jnp.float32) + b1_ref[...]
    h1 = jnp.maximum(h1, 0.0)

    # Layer 2: h1 @ W2t + b2, ReLU
    h2 = jnp.dot(h1.astype(compute_dtype), w2_ref[...],
                 preferred_element_type=jnp.float32) + b2_ref[...]
    h2 = jnp.maximum(h2, 0.0)

    # Layer 3 (narrow logits head): h2 @ W3t + b3
    out = jnp.dot(h2.astype(compute_dtype), w3_ref[...],
                  preferred_element_type=jnp.float32) + b3_ref[...]
    o_ref[...] = out.astype(o_ref.dtype)


def prepare_params(params, *, compute_dtype=jnp.float32):
    """One-time layout plumbing: transpose weights to [in, out] and (optionally)
    cast matmul operands to bf16. Biases stay f32 (epilogue is always f32)."""
    return {
        "w1t": params["w1"].T.astype(compute_dtype),
        "b1": params["b1"].reshape(1, -1).astype(jnp.float32),
        "w2t": params["w2"].T.astype(compute_dtype),
        "b2": params["b2"].reshape(1, -1).astype(jnp.float32),
        "w3t": params["w3"].T.astype(compute_dtype),
        "b3": params["b3"].reshape(1, -1).astype(jnp.float32),
        "compute_dtype": compute_dtype,
    }


def policy_forward(x, prep, *, tile_batch=1024):
    """Run the Policy MLP as a single fused, batch-tiled Pallas kernel.

    x: [batch, input_features] float32 (bf16 also accepted; producers that can
       emit bf16 activations halve the input DMA bytes for free)
    prep: output of prepare_params()
    returns: [batch, num_actions] float32 logits
    """
    w1t, b1 = prep["w1t"], prep["b1"]
    w2t, b2 = prep["w2t"], prep["b2"]
    w3t, b3 = prep["w3t"], prep["b3"]
    compute_dtype = prep["compute_dtype"]
    num_actions = w3t.shape[1]

    batch, in_f = x.shape

    # Batch tile: split the batch into cdiv(batch, tile_batch) near-equal tiles,
    # rounded up to the sublane granule of x's dtype (8 for f32, 16 for bf16).
    # The grid covers at most (sublane-1) extra rows; Pallas masks the ragged
    # last block's out-of-bounds writes, so no wrapper-side jnp.pad is needed.
    sublane = 8 if jnp.dtype(x.dtype).itemsize >= 4 else 16
    n_target = max(1, _cdiv(batch, tile_batch))
    tb = _round_up(_cdiv(batch, n_target), sublane)
    tb = min(tb, _round_up(batch, sublane))
    n_tiles = _cdiv(batch, tb)

    kernel = functools.partial(_policy_mlp_kernel, compute_dtype=compute_dtype)

    # Weights/biases: full-array blocks, index_map pinned to (0,0) so the tiles
    # stay resident in VMEM across the whole batch grid.
    resident = lambda a: pl.BlockSpec(a.shape, lambda i: (0, 0))

    out = pl.pallas_call(
        kernel,
        out_shape=jax.ShapeDtypeStruct((batch, num_actions), jnp.float32),
        grid_spec=pltpu.PrefetchScalarGridSpec(
            num_scalar_prefetch=0,
            grid=(n_tiles,),
            in_specs=[
                pl.BlockSpec((tb, in_f), lambda i: (i, 0)),
                resident(w1t), resident(b1),
                resident(w2t), resident(b2),
                resident(w3t), resident(b3),
            ],
            # Narrow output: last dim == full array dim (num_actions), so this
            # is a legal non-128 block and avoids padded-logits writeback.
            out_specs=pl.BlockSpec((tb, num_actions), lambda i: (i, 0)),
        ),
        compiler_params=pltpu.CompilerParams(
            dimension_semantics=("parallel",),
        ),
    )(x, w1t, b1, w2t, b2, w3t, b3)

    return out


def init_policy_params(key, input_features, h1, h2, num_actions):
    """Parameter init mirroring the PyTorch module.

    Weights: kaiming_uniform (a=0) exactly as the module's _init_parameters,
             i.e. bound = sqrt(6 / fan_in).
    Biases:  nn.Linear default uniform(-1/sqrt(fan_in), 1/sqrt(fan_in))
             (the module only re-initializes weights).
    """
    ks = jax.random.split(key, 6)

    def kaiming_uniform(k, out_f, in_f):
        bound = jnp.sqrt(6.0 / in_f)
        return jax.random.uniform(k, (out_f, in_f), jnp.float32, -bound, bound)

    def bias_init(k, out_f, in_f):
        bound = 1.0 / jnp.sqrt(in_f)
        return jax.random.uniform(k, (1, out_f), jnp.float32, -bound, bound)

    return {
        "w1": kaiming_uniform(ks[0], h1, input_features),
        "b1": bias_init(ks[1], h1, input_features),
        "w2": kaiming_uniform(ks[2], h2, h1),
        "b2": bias_init(ks[3], h2, h1),
        "w3": kaiming_uniform(ks[4], num_actions, h2),
        "b3": bias_init(ks[5], num_actions, h2),
    }


def policy_forward_ref(x, p):
    h1 = jnp.maximum(x @ p["w1"].T + p["b1"], 0.0)
    h2 = jnp.maximum(h1 @ p["w2"].T + p["b2"], 0.0)
    return h2 @ p["w3"].T + p["b3"]


if __name__ == "__main__":
    # Small config consistent with the module:
    #   input_features=32, intermedia_features1=64, intermedia_features2=32,
    #   len(possible_actions)=4, batch=8
    batch, input_features, h1, h2, num_actions = 8, 32, 64, 32, 4

    key = jax.random.PRNGKey(0)
    k_x, k_p = jax.random.split(key)
    x = jax.random.normal(k_x, (batch, input_features), jnp.float32)
    params = init_policy_params(k_p, input_features, h1, h2, num_actions)
    ref = policy_forward_ref(x, params)

    # f32 path (matches the PyTorch module's f32 forward).
    prep_f32 = prepare_params(params, compute_dtype=jnp.float32)
    out = jax.block_until_ready(policy_forward(x, prep_f32))
    assert out.shape == (batch, num_actions), out.shape
    assert jnp.allclose(out, ref, atol=1e-4, rtol=1e-4), "f32 mismatch vs reference"

    # bf16-matmul / f32-accumulate fast path (recommended default on v5e).
    prep_bf16 = prepare_params(params, compute_dtype=jnp.bfloat16)
    out_bf16 = jax.block_until_ready(policy_forward(x, prep_bf16))
    assert out_bf16.shape == (batch, num_actions), out_bf16.shape
    assert jnp.allclose(out_bf16, ref, atol=1e-1, rtol=5e-2), "bf16 mismatch vs reference"

    # Multi-tile batch grid: 600 rows at tile_batch=256 -> 3 exact tiles of 200.
    x_big = jax.random.normal(k_x, (600, input_features), jnp.float32)
    ref_big = policy_forward_ref(x_big, params)
    out_big = jax.block_until_ready(policy_forward(x_big, prep_f32, tile_batch=256))
    assert out_big.shape == (600, num_actions), out_big.shape
    assert jnp.allclose(out_big, ref_big, atol=1e-4, rtol=1e-4), "tiled mismatch"

    # Ragged last block: 1000 rows at tile_batch=512 -> 2 tiles of 504
    # (8 out-of-bounds rows masked on writeback, no jnp.pad).
    x_rag = jax.random.normal(k_x, (1000, input_features), jnp.float32)
    ref_rag = policy_forward_ref(x_rag, params)
    out_rag = jax.block_until_ready(policy_forward(x_rag, prep_f32, tile_batch=512))
    assert out_rag.shape == (1000, num_actions), out_rag.shape
    assert jnp.allclose(out_rag, ref_rag, atol=1e-4, rtol=1e-4), "ragged mismatch"

    print("KERNEL_OK")
</pallas_src>

<mosaic_0001>
module attributes {stable_mosaic.version = 11 : i64} {
  func.func @_policy_mlp_kernel(%arg0: i32, %arg1: memref<8x32xf32, #tpu.memory_space<vmem>>, %arg2: memref<32x64xf32, #tpu.memory_space<vmem>>, %arg3: memref<1x64xf32, #tpu.memory_space<vmem>>, %arg4: memref<64x32xf32, #tpu.memory_space<vmem>>, %arg5: memref<1x32xf32, #tpu.memory_space<vmem>>, %arg6: memref<32x4xf32, #tpu.memory_space<vmem>>, %arg7: memref<1x4xf32, #tpu.memory_space<vmem>>, %arg8: memref<8x4xf32, #tpu.memory_space<vmem>>) attributes {dimension_semantics = [#tpu.dimension_semantics<parallel>], iteration_bounds = array<i64: 1>, scalar_prefetch = 0 : i64, scratch_operands = 0 : i64, tpu.core_type = #tpu.core_type<tc>, window_params = [{transform_indices = @transform_0, window_bounds = array<i64: 8, 32>}, {pipeline_mode = #tpu.pipeline_mode<synchronous>, transform_indices = @transform_1, window_bounds = array<i64: 32, 64>}, {pipeline_mode = #tpu.pipeline_mode<synchronous>, transform_indices = @transform_2, window_bounds = array<i64: 1, 64>}, {pipeline_mode = #tpu.pipeline_mode<synchronous>, transform_indices = @transform_3, window_bounds = array<i64: 64, 32>}, {pipeline_mode = #tpu.pipeline_mode<synchronous>, transform_indices = @transform_4, window_bounds = array<i64: 1, 32>}, {pipeline_mode = #tpu.pipeline_mode<synchronous>, transform_indices = @transform_5, window_bounds = array<i64: 32, 4>}, {pipeline_mode = #tpu.pipeline_mode<synchronous>, transform_indices = @transform_6, window_bounds = array<i64: 1, 4>}, {transform_indices = @transform_7, window_bounds = array<i64: 8, 4>}]} {
    %c0 = arith.constant 0 : index
    %c0_0 = arith.constant 0 : index
    %0 = vector.load %arg1[%c0, %c0_0] : memref<8x32xf32, #tpu.memory_space<vmem>>, vector<8x32xf32>
    %c0_1 = arith.constant 0 : index
    %c0_2 = arith.constant 0 : index
    %1 = vector.load %arg2[%c0_1, %c0_2] : memref<32x64xf32, #tpu.memory_space<vmem>>, vector<32x64xf32>
    %cst = arith.constant dense<0.000000e+00> : vector<8x64xf32>
    %2 = tpu.matmul %0, %1, %cst {dimension_numbers = #tpu.dot_dimension_numbers<[1], [0], [0], [1], [0, 0, 1, 1], [], []>} : vector<8x32xf32>, vector<32x64xf32>, vector<8x64xf32> -> vector<8x64xf32>
    %c0_3 = arith.constant 0 : index
    %c0_4 = arith.constant 0 : index
    %3 = vector.load %arg3[%c0_3, %c0_4] : memref<1x64xf32, #tpu.memory_space<vmem>>, vector<1x64xf32>
    %4 = vector.broadcast %3 : vector<1x64xf32> to vector<8x64xf32>
    %5 = arith.addf %2, %4 : vector<8x64xf32>
    %cst_5 = arith.constant 0.000000e+00 : f32
    %6 = vector.broadcast %cst_5 : f32 to vector<8x64xf32>
    %7 = arith.maximumf %5, %6 : vector<8x64xf32>
    %c0_6 = arith.constant 0 : index
    %c0_7 = arith.constant 0 : index
    %8 = vector.load %arg4[%c0_6, %c0_7] : memref<64x32xf32, #tpu.memory_space<vmem>>, vector<64x32xf32>
    %cst_8 = arith.constant dense<0.000000e+00> : vector<8x32xf32>
    %9 = tpu.matmul %7, %8, %cst_8 {dimension_numbers = #tpu.dot_dimension_numbers<[1], [0], [0], [1], [0, 0, 1, 1], [], []>} : vector<8x64xf32>, vector<64x32xf32>, vector<8x32xf32> -> vector<8x32xf32>
    %c0_9 = arith.constant 0 : index
    %c0_10 = arith.constant 0 : index
    %10 = vector.load %arg5[%c0_9, %c0_10] : memref<1x32xf32, #tpu.memory_space<vmem>>, vector<1x32xf32>
    %11 = vector.broadcast %10 : vector<1x32xf32> to vector<8x32xf32>
    %12 = arith.addf %9, %11 : vector<8x32xf32>
    %cst_11 = arith.constant 0.000000e+00 : f32
    %13 = vector.broadcast %cst_11 : f32 to vector<8x32xf32>
    %14 = arith.maximumf %12, %13 : vector<8x32xf32>
    %c0_12 = arith.constant 0 : index
    %c0_13 = arith.constant 0 : index
    %15 = vector.load %arg6[%c0_12, %c0_13] : memref<32x4xf32, #tpu.memory_space<vmem>>, vector<32x4xf32>
    %cst_14 = arith.constant dense<0.000000e+00> : vector<8x4xf32>
    %16 = tpu.matmul %14, %15, %cst_14 {dimension_numbers = #tpu.dot_dimension_numbers<[1], [0], [0], [1], [0, 0, 1, 1], [], []>} : vector<8x32xf32>, vector<32x4xf32>, vector<8x4xf32> -> vector<8x4xf32>
    %c0_15 = arith.constant 0 : index
    %c0_16 = arith.constant 0 : index
    %17 = vector.load %arg7[%c0_15, %c0_16] : memref<1x4xf32, #tpu.memory_space<vmem>>, vector<1x4xf32>
    %18 = vector.broadcast %17 : vector<1x4xf32> to vector<8x4xf32>
    %19 = arith.addf %16, %18 : vector<8x4xf32>
    %c0_17 = arith.constant 0 : index
    %c0_18 = arith.constant 0 : index
    %20 = vector.load %arg8[%c0_17, %c0_18] : memref<8x4xf32, #tpu.memory_space<vmem>>, vector<8x4xf32>
    tpu.vector_store %arg8[%c0_17, %c0_18], %19 {strides = array<i32>} : memref<8x4xf32, #tpu.memory_space<vmem>>, vector<8x4xf32>,
    return
  }
  func.func @transform_0(%arg0: i32) -> (i32, i32) {
    %c0_i32 = arith.constant 0 : i32
    %c0_i32_0 = arith.constant 0 : i32
    return %arg0, %c0_i32 : i32, i32
  }
  func.func @transform_1(%arg0: i32) -> (i32, i32) {
    %c0_i32 = arith.constant 0 : i32
    %c0_i32_0 = arith.constant 0 : i32
    %c0_i32_1 = arith.constant 0 : i32
    return %c0_i32, %c0_i32_0 : i32, i32
  }
  func.func @transform_2(%arg0: i32) -> (i32, i32) {
    %c0_i32 = arith.constant 0 : i32
    %c0_i32_0 = arith.constant 0 : i32
    %c0_i32_1 = arith.constant 0 : i32
    return %c0_i32, %c0_i32_0 : i32, i32
  }
  func.func @transform_3(%arg0: i32) -> (i32, i32) {
    %c0_i32 = arith.constant 0 : i32
    %c0_i32_0 = arith.constant 0 : i32
    %c0_i32_1 = arith.constant 0 : i32
    return %c0_i32, %c0_i32_0 : i32, i32
  }
  func.func @transform_4(%arg0: i32) -> (i32, i32) {
    %c0_i32 = arith.constant 0 : i32
    %c0_i32_0 = arith.constant 0 : i32
    %c0_i32_1 = arith.constant 0 : i32
    return %c0_i32, %c0_i32_0 : i32, i32
  }
  func.func @transform_5(%arg0: i32) -> (i32, i32) {
    %c0_i32 = arith.constant 0 : i32
    %c0_i32_0 = arith.constant 0 : i32
    %c0_i32_1 = arith.constant 0 : i32
    return %c0_i32, %c0_i32_0 : i32, i32
  }
  func.func @transform_6(%arg0: i32) -> (i32, i32) {
    %c0_i32 = arith.constant 0 : i32
    %c0_i32_0 = arith.constant 0 : i32
    %c0_i32_1 = arith.constant 0 : i32
    return %c0_i32, %c0_i32_0 : i32, i32
  }
  func.func @transform_7(%arg0: i32) -> (i32, i32) {
    %c0_i32 = arith.constant 0 : i32
    %c0_i32_0 = arith.constant 0 : i32
    return %arg0, %c0_i32 : i32, i32
  }
}

</mosaic_0001>

<llo_original>
// kernel: tpu_custom_call.1
$region0: #{tpu_custom_call.1}
  #allocation0 [shape = 'u32[]', space=smem, size = 0x4, offset = 0x4, fixed_abs, tag = 'smem constant byte address 0x4 - core index']
  #allocation1 [shape = 'u32[144,128]{1,0:T(1,128)}', space=vmem, size = 0x12000, scoped, tag = 'internal scratch']
  %s0 = inlined_call_operand.vmem [shape: f32[8,32], index: 0, kind: input, shape index: {}]
  %s1 = inlined_call_operand.vmem [shape: f32[32,64], index: 1, kind: input, shape index: {}]
  %s2 = inlined_call_operand.vmem [shape: f32[1,64], index: 2, kind: input, shape index: {}]
  %s3 = inlined_call_operand.vmem [shape: f32[64,32], index: 3, kind: input, shape index: {}]
  %s4 = inlined_call_operand.vmem [shape: f32[1,32], index: 4, kind: input, shape index: {}]
  %s5 = inlined_call_operand.vmem [shape: f32[32,4], index: 5, kind: input, shape index: {}]
  %s6 = inlined_call_operand.vmem [shape: f32[1,4], index: 6, kind: input, shape index: {}]
  %s7 = inlined_call_operand.vmem [shape: f32[8,4], index: 7, kind: output, shape index: {}]
  %s8 = sld [smem:[#allocation0]]
  $region38: #{tpu_custom_call.1} parent=0
    _
  %s10 = ssub.s32 1, %s8
  %s11 = scalar_select 0, %s10, %s8
  // Predicated region
  $region2: #{tpu_custom_call.1} parent=0 // pred_check
    _
  $region3: #{tpu_custom_call.1} parent=0 // pred_check_branch
    %13 = sbr.rel (0) target = $region5
  $region4: #{tpu_custom_call.1} parent=0 // pred_region
    _
  $region5: #{tpu_custom_call.1} parent=0 // pred_fallthru
    _
  // Predicated region
  $region6: #{tpu_custom_call.1} parent=0 // pred_check
    _
  $region7: #{tpu_custom_call.1} parent=0 // pred_check_branch
    %15 = sbr.rel (0) target = $region9
  $region8: #{tpu_custom_call.1} parent=0 // pred_region
    _
  $region9: #{tpu_custom_call.1} parent=0 // pred_fallthru
    _
  // Predicated region
  $region10: #{tpu_custom_call.1} parent=0 // pred_check
    _
  $region11: #{tpu_custom_call.1} parent=0 // pred_check_branch
    %17 = sbr.rel (0) target = $region13
  $region12: #{tpu_custom_call.1} parent=0 // pred_region
    _
  $region13: #{tpu_custom_call.1} parent=0 // pred_fallthru
    _
  // Predicated region
  $region14: #{tpu_custom_call.1} parent=0 // pred_check
    _
  $region15: #{tpu_custom_call.1} parent=0 // pred_check_branch
    %19 = sbr.rel (0) target = $region17
  $region16: #{tpu_custom_call.1} parent=0 // pred_region
    _
  $region17: #{tpu_custom_call.1} parent=0 // pred_fallthru
    _
  // Predicated region
  $region18: #{tpu_custom_call.1} parent=0 // pred_check
    _
  $region19: #{tpu_custom_call.1} parent=0 // pred_check_branch
    %21 = sbr.rel (0) target = $region21
  $region20: #{tpu_custom_call.1} parent=0 // pred_region
    _
  $region21: #{tpu_custom_call.1} parent=0 // pred_fallthru
    _
  // Predicated region
  $region22: #{tpu_custom_call.1} parent=0 // pred_check
    _
  $region23: #{tpu_custom_call.1} parent=0 // pred_check_branch
    %23 = sbr.rel (0) target = $region25
  $region24: #{tpu_custom_call.1} parent=0 // pred_region
    _
  $region25: #{tpu_custom_call.1} parent=0 // pred_fallthru
    _
  // Predicated region
  $region26: #{tpu_custom_call.1} parent=0 // pred_check
    _
  $region27: #{tpu_custom_call.1} parent=0 // pred_check_branch
    %25 = sbr.rel (0) target = $region29
  $region28: #{tpu_custom_call.1} parent=0 // pred_region
    _
  $region29: #{tpu_custom_call.1} parent=0 // pred_fallthru
    _
  %v26 = vld [vmem:[%s0] sm:$0xff]
  %v27 = vld [vmem:[%s1] sm:$0xff]
  %v28 = vld [vmem:[%s1 + $0x8] sm:$0xff]
  %v29 = vld [vmem:[%s1 + $0x10] sm:$0xff]
  %v30 = vld [vmem:[%s1 + $0x18] sm:$0xff]
  %v31 = vld [vmem:[%s2] sm:$0x1]
  %v33 = vlaneseq
  %v34 = vshrl.u32 %v33, 7
  %v35 = vsub.s32 0, %v34
  %v36 = vrot.slane %v31, %v35
  %vm38 = vcmask 261120
  %v40 = vsel %vm38, %v26, 0
  %42 = vmatprep.subr.mxu0 0.0
  %43 = vmatpush1.msra.mxu0 %v27
  %44 = vmatprep.subr.mxu0 0.0
  %45 = vmatpush1.msra.mxu0 %v28
  %46 = vmatprep.subr.mxu0 0.0
  %47 = vmatpush1.msra.mxu0 %v29
  %48 = vmatprep.subr.mxu0 0.0
  %49 = vmatpush1.msra.mxu0 %v30
  %50 = vmatprep.subr.mxu0 0.0
  %51 = vmatpush1.msra.mxu0 0.0
  %52 = vmatprep.subr.mxu0 0.0
  %53 = vmatpush1.msra.mxu0 0.0
  %54 = vmatprep.subr.mxu0 0.0
  %55 = vmatpush1.msra.mxu0 0.0
  %56 = vmatprep.subr.mxu0 0.0
  %57 = vmatpush1.msra.mxu0 0.0
  %58 = vmatprep.subr.mxu0 0.0
  %59 = vmatpush1.msra.mxu0 0.0
  %60 = vmatprep.subr.mxu0 0.0
  %61 = vmatpush1.msra.mxu0 0.0
  %62 = vmatprep.subr.mxu0 0.0
  %63 = vmatpush1.msra.mxu0 0.0
  %64 = vmatprep.subr.mxu0 0.0
  %65 = vmatpush1.msra.mxu0 0.0
  %66 = vmatprep.subr.mxu0 0.0
  %67 = vmatpush1.msra.mxu0 0.0
  %68 = vmatprep.subr.mxu0 0.0
  %69 = vmatpush1.msra.mxu0 0.0
  %70 = vmatprep.subr.mxu0 0.0
  %71 = vmatpush1.msra.mxu0 0.0
  %72 = vmatprep.subr.mxu0 0.0
  %73 = vmatpush1.msra.mxu0 0.0
  %74 = vmatprep.subr.mxu0 0.0
  %75 = vmatpush1.msra.mxu0 0.0
  %76 = vmatprep.subr.mxu0 0.0
  %77 = vmatpush1.msra.mxu0 0.0
  %78 = vmatprep.subr.mxu0 0.0
  %79 = vmatpush1.msra.mxu0 0.0
  %80 = vmatprep.subr.mxu0 0.0
  %81 = vmatpush1.msra.mxu0 0.0
  %82 = vmatprep.subr.mxu0 0.0
  %83 = vmatpush1.msra.mxu0 0.0
  %84 = vmatprep.subr.mxu0 0.0
  %85 = vmatpush1.msra.mxu0 0.0
  %86 = vmatprep.subr.mxu0 0.0
  %87 = vmatpush1.msra.mxu0 0.0
  %88 = vmatprep.subr.mxu0 0.0
  %89 = vmatpush1.msra.mxu0 0.0
  %90 = vmatprep.subr.mxu0 0.0
  %91 = vmatpush1.msra.mxu0 0.0
  %92 = vmatprep.subr.mxu0 0.0
  %93 = vmatpush1.msra.mxu0 0.0
  %94 = vmatprep.subr.mxu0 0.0
  %95 = vmatpush1.msra.mxu0 0.0
  %96 = vmatprep.subr.mxu0 0.0
  %97 = vmatpush1.msra.mxu0 0.0
  %98 = vmatprep.subr.mxu0 0.0
  %99 = vmatpush1.msra.mxu0 0.0
  %100 = vmatprep.subr.mxu0 0.0
  %101 = vmatpush1.msra.mxu0 0.0
  %102 = vmatprep.subr.mxu0 0.0
  %103 = vmatpush1.msra.mxu0 0.0
  %104 = vmatprep.subr.mxu0 0.0
  %105 = vmatpush1.msra.mxu0 0.0
  %106 = vmatprep.mubr.f32.mxu0 0.0
  %107 = vmatmul.mubr.f32.gmra.mrb[0].mxu0 %v40
  %v108 = vpop.f32.mrb[0].mxu0
  %v109 = vadd.f32 %v36, %v108
  %v110 = vpop.f32.mrb[0].mxu0
  %111 = vdwg.mxu0
  %v112 = vmax.f32 %v109, 0.0
  %v113 = vld [vmem:[%s3] sm:$0xff]
  %v114 = vld [vmem:[%s3 + $0x8] sm:$0xff]
  %v115 = vld [vmem:[%s3 + $0x10] sm:$0xff]
  %v116 = vld [vmem:[%s3 + $0x18] sm:$0xff]
  %v117 = vld [vmem:[%s3 + $0x20] sm:$0xff]
  %v118 = vld [vmem:[%s3 + $0x28] sm:$0xff]
  %v119 = vld [vmem:[%s3 + $0x30] sm:$0xff]
  %v120 = vld [vmem:[%s3 + $0x38] sm:$0xff]
  %v121 = vld [vmem:[%s4] sm:$0x1]
  %v123 = vlaneseq
  %v124 = vshrl.u32 %v123, 7
  %v125 = vsub.s32 0, %v124
  %v126 = vrot.slane %v121, %v125
  %vm128 = vcmask 523264
  %v130 = vsel %vm128, %v112, 0
  %132 = vmatprep.subr.mxu0 0.0
  %133 = vmatpush1.msra.mxu0 %v113
  %134 = vmatprep.subr.mxu0 0.0
  %135 = vmatpush1.msra.mxu0 %v114
  %136 = vmatprep.subr.mxu0 0.0
  %137 = vmatpush1.msra.mxu0 %v115
  %138 = vmatprep.subr.mxu0 0.0
  %139 = vmatpush1.msra.mxu0 %v116
  %140 = vmatprep.subr.mxu0 0.0
  %141 = vmatpush1.msra.mxu0 %v117
  %142 = vmatprep.subr.mxu0 0.0
  %143 = vmatpush1.msra.mxu0 %v118
  %144 = vmatprep.subr.mxu0 0.0
  %145 = vmatpush1.msra.mxu0 %v119
  %146 = vmatprep.subr.mxu0 0.0
  %147 = vmatpush1.msra.mxu0 %v120
  %148 = vmatprep.subr.mxu0 0.0
  %149 = vmatpush1.msra.mxu0 0.0
  %150 = vmatprep.subr.mxu0 0.0
  %151 = vmatpush1.msra.mxu0 0.0
  %152 = vmatprep.subr.mxu0 0.0
  %153 = vmatpush1.msra.mxu0 0.0
  %154 = vmatprep.subr.mxu0 0.0
  %155 = vmatpush1.msra.mxu0 0.0
  %156 = vmatprep.subr.mxu0 0.0
  %157 = vmatpush1.msra.mxu0 0.0
  %158 = vmatprep.subr.mxu0 0.0
  %159 = vmatpush1.msra.mxu0 0.0
  %160 = vmatprep.subr.mxu0 0.0
  %161 = vmatpush1.msra.mxu0 0.0
  %162 = vmatprep.subr.mxu0 0.0
  %163 = vmatpush1.msra.mxu0 0.0
  %164 = vmatprep.subr.mxu0 0.0
  %165 = vmatpush1.msra.mxu0 0.0
  %166 = vmatprep.subr.mxu0 0.0
  %167 = vmatpush1.msra.mxu0 0.0
  %168 = vmatprep.subr.mxu0 0.0
  %169 = vmatpush1.msra.mxu0 0.0
  %170 = vmatprep.subr.mxu0 0.0
  %171 = vmatpush1.msra.mxu0 0.0
  %172 = vmatprep.subr.mxu0 0.0
  %173 = vmatpush1.msra.mxu0 0.0
  %174 = vmatprep.subr.mxu0 0.0
  %175 = vmatpush1.msra.mxu0 0.0
  %176 = vmatprep.subr.mxu0 0.0
  %177 = vmatpush1.msra.mxu0 0.0
  %178 = vmatprep.subr.mxu0 0.0
  %179 = vmatpush1.msra.mxu0 0.0
  %180 = vmatprep.subr.mxu0 0.0
  %181 = vmatpush1.msra.mxu0 0.0
  %182 = vmatprep.subr.mxu0 0.0
  %183 = vmatpush1.msra.mxu0 0.0
  %184 = vmatprep.subr.mxu0 0.0
  %185 = vmatpush1.msra.mxu0 0.0
  %186 = vmatprep.subr.mxu0 0.0
  %187 = vmatpush1.msra.mxu0 0.0
  %188 = vmatprep.subr.mxu0 0.0
  %189 = vmatpush1.msra.mxu0 0.0
  %190 = vmatprep.subr.mxu0 0.0
  %191 = vmatpush1.msra.mxu0 0.0
  %192 = vmatprep.subr.mxu0 0.0
  %193 = vmatpush1.msra.mxu0 0.0
  %194 = vmatprep.subr.mxu0 0.0
  %195 = vmatpush1.msra.mxu0 0.0
  %196 = vmatprep.mubr.f32.mxu0 0.0
  %197 = vmatmul.mubr.f32.gmra.mrb[0].mxu0 %v130
  %v198 = vpop.f32.mrb[0].mxu0
  %v199 = vadd.f32 %v126, %v198
  %v200 = vpop.f32.mrb[0].mxu0
  %201 = vdwg.mxu0
  %v202 = vmax.f32 %v199, 0.0
  %v203 = vld [vmem:[%s5] sm:$0xff]
  %v204 = vld [vmem:[%s5 + $0x8] sm:$0xff]
  %v205 = vld [vmem:[%s5 + $0x10] sm:$0xff]
  %v206 = vld [vmem:[%s5 + $0x18] sm:$0xff]
  %v207 = vld [vmem:[%s6] sm:$0x1]
  %v209 = vlaneseq
  %v210 = vshrl.u32 %v209, 7
  %v211 = vsub.s32 0, %v210
  %v212 = vrot.slane %v207, %v211
  %v215 = vsel %vm38, %v202, 0
  %217 = vmatprep.subr.mxu0 0.0
  %218 = vmatpush1.msra.mxu0 %v203
  %219 = vmatprep.subr.mxu0 0.0
  %220 = vmatpush1.msra.mxu0 %v204
  %221 = vmatprep.subr.mxu0 0.0
  %222 = vmatpush1.msra.mxu0 %v205
  %223 = vmatprep.subr.mxu0 0.0
  %224 = vmatpush1.msra.mxu0 %v206
  %225 = vmatprep.subr.mxu0 0.0
  %226 = vmatpush1.msra.mxu0 0.0
  %227 = vmatprep.subr.mxu0 0.0
  %228 = vmatpush1.msra.mxu0 0.0
  %229 = vmatprep.subr.mxu0 0.0
  %230 = vmatpush1.msra.mxu0 0.0
  %231 = vmatprep.subr.mxu0 0.0
  %232 = vmatpush1.msra.mxu0 0.0
  %233 = vmatprep.subr.mxu0 0.0
  %234 = vmatpush1.msra.mxu0 0.0
  %235 = vmatprep.subr.mxu0 0.0
  %236 = vmatpush1.msra.mxu0 0.0
  %237 = vmatprep.subr.mxu0 0.0
  %238 = vmatpush1.msra.mxu0 0.0
  %239 = vmatprep.subr.mxu0 0.0
  %240 = vmatpush1.msra.mxu0 0.0
  %241 = vmatprep.subr.mxu0 0.0
  %242 = vmatpush1.msra.mxu0 0.0
  %243 = vmatprep.subr.mxu0 0.0
  %244 = vmatpush1.msra.mxu0 0.0
  %245 = vmatprep.subr.mxu0 0.0
  %246 = vmatpush1.msra.mxu0 0.0
  %247 = vmatprep.subr.mxu0 0.0
  %248 = vmatpush1.msra.mxu0 0.0
  %249 = vmatprep.subr.mxu0 0.0
  %250 = vmatpush1.msra.mxu0 0.0
  %251 = vmatprep.subr.mxu0 0.0
  %252 = vmatpush1.msra.mxu0 0.0
  %253 = vmatprep.subr.mxu0 0.0
  %254 = vmatpush1.msra.mxu0 0.0
  %255 = vmatprep.subr.mxu0 0.0
  %256 = vmatpush1.msra.mxu0 0.0
  %257 = vmatprep.subr.mxu0 0.0
  %258 = vmatpush1.msra.mxu0 0.0
  %259 = vmatprep.subr.mxu0 0.0
  %260 = vmatpush1.msra.mxu0 0.0
  %261 = vmatprep.subr.mxu0 0.0
  %262 = vmatpush1.msra.mxu0 0.0
  %263 = vmatprep.subr.mxu0 0.0
  %264 = vmatpush1.msra.mxu0 0.0
  %265 = vmatprep.subr.mxu0 0.0
  %266 = vmatpush1.msra.mxu0 0.0
  %267 = vmatprep.subr.mxu0 0.0
  %268 = vmatpush1.msra.mxu0 0.0
  %269 = vmatprep.subr.mxu0 0.0
  %270 = vmatpush1.msra.mxu0 0.0
  %271 = vmatprep.subr.mxu0 0.0
  %272 = vmatpush1.msra.mxu0 0.0
  %273 = vmatprep.subr.mxu0 0.0
  %274 = vmatpush1.msra.mxu0 0.0
  %275 = vmatprep.subr.mxu0 0.0
  %276 = vmatpush1.msra.mxu0 0.0
  %277 = vmatprep.subr.mxu0 0.0
  %278 = vmatpush1.msra.mxu0 0.0
  %279 = vmatprep.subr.mxu0 0.0
  %280 = vmatpush1.msra.mxu0 0.0
  %281 = vmatprep.mubr.f32.mxu0 0.0
  %282 = vmatmul.mubr.f32.gmra.mrb[0].mxu0 %v215
  %v283 = vpop.f32.mrb[0].mxu0
  %v284 = vadd.f32 %v212, %v283
  %v285 = vpop.f32.mrb[0].mxu0
  %286 = vdwg.mxu0
  %vm287 = vcmask 31744
  %288 = vst.msk [vmem:[%s7] sm:$0xff] %vm287, %v284
  // Predicated region
  $region30: #{tpu_custom_call.1} parent=0 // pred_check
    _
  $region31: #{tpu_custom_call.1} parent=0 // pred_check_branch
    %290 = sbr.rel (0) target = $region33
  $region32: #{tpu_custom_call.1} parent=0 // pred_region
    _
  $region33: #{tpu_custom_call.1} parent=0 // pred_fallthru
    _
  // Predicated region
  $region34: #{tpu_custom_call.1} parent=0 // pred_check
    _
  $region35: #{tpu_custom_call.1} parent=0 // pred_check_branch
    %292 = sbr.rel (0) target = $region37
  $region36: #{tpu_custom_call.1} parent=0 // pred_region
    _
  $region37: #{tpu_custom_call.1} parent=0 // pred_fallthru
    _

</llo_original>
